<compile_context>
chip_gen: v6e
topology: v6e:2x2x1
jax: 0.10.0
libtpu: 0.0.40
codegen_flags: <defaults>
</compile_context>

<pallas_src>
import functools

import jax
import jax.numpy as jnp
from jax.experimental import pallas as pl
from jax.experimental.pallas import tpu as pltpu

_LANE = 128


def _focal_terms(pred_nat, gt_nat, valid):
    """Combined per-element focal term and positive-count, both f32.

    term = log(pred)*(1-pred)^2            where gt == 1
         = log(1-pred)*pred^2*(1-gt)^4     where gt <  1
         = 0                               where gt >  1   (matches reference)
    """
    is_pos = gt_nat == 1            # compare on native dtype (bf16-friendly)
    neg_ok = gt_nat < 1
    p = pred_nat.astype(jnp.float32)
    g = gt_nat.astype(jnp.float32)
    one_m_p = 1.0 - p
    one_m_g = 1.0 - g
    lg = jnp.log(jnp.where(is_pos, p, one_m_p))     # single EUP log / element
    sq = one_m_g * one_m_g
    neg_w = (p * p) * (sq * sq)                     # pred^2 * (1-gt)^4
    pos_w = one_m_p * one_m_p                       # (1-pred)^2
    w = jnp.where(is_pos, pos_w, jnp.where(neg_ok, neg_w, 0.0))
    term = lg * w
    cnt = is_pos.astype(jnp.float32)
    if valid is not None:
        # Select AFTER the log: garbage rows may be NaN/Inf but are dropped.
        term = jnp.where(valid, term, 0.0)
        cnt = jnp.where(valid, cnt, 0.0)
    return term, cnt


def _fold8(x):
    """Reduce (r, 128) -> (8, 128) with pure vreg adds (VPU only)."""
    r, lane = x.shape
    if r % 8 == 0:
        return x.reshape(r // 8, 8, lane).sum(axis=0)
    # Tiny / odd tile (only when the whole slab fits in a single small tile):
    # full sublane reduce, deposited in sublane row 0.
    s = x.sum(axis=0, keepdims=True)
    row0 = jax.lax.broadcasted_iota(jnp.int32, (8, lane), 0) == 0
    return jnp.where(row0, s, 0.0)


def _focal_kernel(pred_ref, gt_ref, acc_ref, *, rows, tile_rows, chunk,
                  tiles_per_p, n_tiles, partial_last, has_oob):
    i = pl.program_id(1)

    @pl.when(i == 0)
    def _():
        acc_ref[...] = jnp.zeros_like(acc_ref)

    block_idx = pl.program_id(0) * tiles_per_p + i
    last = n_tiles - 1
    nchunks = tile_rows // chunk          # static; chunk always divides tile_rows

    def make_body(masked):
        def body():
            row_base = block_idx * tile_rows

            def chunk_fn(c, carry):
                t_acc, n_acc = carry
                if nchunks == 1:
                    p_nat = pred_ref[...]
                    g_nat = gt_ref[...]
                    off = 0
                else:
                    off = c * chunk
                    start = pl.multiple_of(off, chunk)
                    p_nat = pred_ref[pl.ds(start, chunk), :]
                    g_nat = gt_ref[pl.ds(start, chunk), :]
                if masked:
                    ids = jax.lax.broadcasted_iota(jnp.int32, p_nat.shape, 0)
                    valid = (ids + (row_base + off)) < rows
                else:
                    valid = None
                term, cnt = _focal_terms(p_nat, g_nat, valid)
                return t_acc + _fold8(term), n_acc + _fold8(cnt)

            zero = jnp.zeros((8, _LANE), jnp.float32)
            if nchunks == 1:
                t_acc, n_acc = chunk_fn(0, (zero, zero))
            else:
                t_acc, n_acc = jax.lax.fori_loop(
                    0, nchunks, chunk_fn, (zero, zero), unroll=True)
            # Direct accumulation into 8x128-aligned slices (no concat temp).
            acc_ref[0, 0:8, :] += t_acc
            acc_ref[0, 8:16, :] += n_acc
        return body

    if (not partial_last) and (not has_oob):
        make_body(False)()                                  # every tile full
    elif partial_last:
        pl.when(block_idx < last)(make_body(False))         # interior: fast path
        pl.when(block_idx == last)(make_body(True))         # last: masked path
        # block_idx > last (clamped OOB grid step): skip compute entirely.
    else:  # last tile is full, but the megacore split has out-of-range steps
        pl.when(block_idx <= last)(make_body(False))


def _round_up(x, m):
    return ((x + m - 1) // m) * m


@functools.partial(jax.jit, static_argnames=("tile_rows",))
def focal_loss(pred, gt, tile_rows=1024):
    """pred, gt: same-shape float arrays (e.g. NCHW). Returns scalar loss."""
    assert pred.shape == gt.shape
    n = pred.size

    total = jnp.float32(0.0)
    num_pos = jnp.float32(0.0)

    if n % _LANE == 0:
        # Common heatmap case: zero-copy reshape of the original arrays.
        n_main = n
        rows = n // _LANE
        pred2d = pred.reshape(rows, _LANE)
        gt2d = gt.reshape(rows, _LANE)
        pred_tail = gt_tail = None
    else:
        # Fallback for awkward sizes: sliced bulk + <128-element JAX tail.
        # TODO(synk): a manual-DMA (memory_space=pl.ANY) path could avoid the
        # slice copy here; callers with 128-multiple sizes take the free path.
        pred_flat = pred.reshape(-1)
        gt_flat = gt.reshape(-1)
        n_main = (n // _LANE) * _LANE
        rows = n_main // _LANE
        pred2d = pred_flat[:n_main].reshape(rows, _LANE) if rows > 0 else None
        gt2d = gt_flat[:n_main].reshape(rows, _LANE) if rows > 0 else None
        pred_tail = pred_flat[n_main:]
        gt_tail = gt_flat[n_main:]

    if rows > 0:
        itemsize = jnp.dtype(pred.dtype).itemsize
        # Sublane multiple for the native dtype (f32: 8, bf16: 16, int8: 32).
        sub = max(8, 32 // max(itemsize, 1))
        # Whole slab in one tile when it fits (always a legal block); else a
        # sub-aligned tile with a masked last block.
        tr = rows if rows <= tile_rows else _round_up(tile_rows, sub)
        n_tiles = -(-rows // tr)
        p_axis = 2 if n_tiles >= 2 else 1              # megacore split (v7x)
        tiles_per_p = -(-n_tiles // p_axis)
        partial_last = (n_tiles * tr != rows)
        has_oob = (p_axis * tiles_per_p != n_tiles)
        last_block = n_tiles - 1

        # Chunk rows processed per inner-loop step (bounds VMEM temporaries).
        if tr > 256 and tr % 256 == 0:
            chunk = 256
        elif tr > 128 and tr % 128 == 0:
            chunk = 128
        else:
            chunk = tr

        def in_map(p, i):
            b = p * tiles_per_p + i
            if has_oob:
                b = jnp.minimum(b, last_block)   # OOB steps re-read last block;
            return (b, 0)                        # their compute is skipped.

        kernel = functools.partial(
            _focal_kernel, rows=rows, tile_rows=tr, chunk=chunk,
            tiles_per_p=tiles_per_p, n_tiles=n_tiles,
            partial_last=partial_last, has_oob=has_oob)

        cost = pl.CostEstimate(
            flops=13 * n_main,
            transcendentals=n_main,
            bytes_accessed=2 * n_main * itemsize + p_axis * 16 * _LANE * 4)

        partials = pl.pallas_call(
            kernel,
            out_shape=jax.ShapeDtypeStruct((p_axis, 16, _LANE), jnp.float32),
            grid_spec=pltpu.PrefetchScalarGridSpec(
                num_scalar_prefetch=0,
                grid=(p_axis, tiles_per_p),
                in_specs=[pl.BlockSpec((tr, _LANE), in_map),
                          pl.BlockSpec((tr, _LANE), in_map)],
                out_specs=pl.BlockSpec((1, 16, _LANE), lambda p, i: (p, 0, 0)),
            ),
            compiler_params=pltpu.CompilerParams(
                dimension_semantics=("parallel", "arbitrary")),
            cost_estimate=cost,
        )(pred2d, gt2d)

        total = total + partials[:, 0:8, :].sum()
        num_pos = num_pos + partials[:, 8:16, :].sum()

    if pred_tail is not None and n > n_main:
        pt = pred_tail.astype(jnp.float32)
        gtt = gt_tail.astype(jnp.float32)
        pos_t = gtt == 1.0
        lg = jnp.log(jnp.where(pos_t, pt, 1.0 - pt))
        w = jnp.where(pos_t, (1.0 - pt) ** 2,
                      jnp.where(gtt < 1.0, pt * pt * (1.0 - gtt) ** 4, 0.0))
        total = total + (lg * w).sum()
        num_pos = num_pos + pos_t.astype(jnp.float32).sum()

    # Reference: -neg if num_pos == 0 else -(pos+neg)/num_pos.
    # With the combined sum these branches coincide: -total / max(num_pos, 1).
    return -total / jnp.maximum(num_pos, jnp.float32(1.0))


def _ref_focal_loss(pred, gt):
    """Pure-JAX reference mirroring the PyTorch _neg_loss."""
    pred = pred.astype(jnp.float32)
    gt = gt.astype(jnp.float32)
    pos_inds = (gt == 1.0).astype(jnp.float32)
    neg_inds = (gt < 1.0).astype(jnp.float32)
    neg_weights = (1.0 - gt) ** 4
    pos_loss = jnp.log(pred) * (1.0 - pred) ** 2 * pos_inds
    neg_loss = jnp.log(1.0 - pred) * pred ** 2 * neg_weights * neg_inds
    num_pos = pos_inds.sum()
    pos_loss = pos_loss.sum()
    neg_loss = neg_loss.sum()
    return jnp.where(num_pos == 0.0,
                     -neg_loss,
                     -(pos_loss + neg_loss) / jnp.maximum(num_pos, 1.0))


if __name__ == "__main__":
    key = jax.random.PRNGKey(0)
    k1, k2, k3, k4, k5, k6 = jax.random.split(key, 6)

    # Test 1: small NCHW heatmaps (zero-copy path, single tile).
    B, C, H, W = 2, 4, 16, 16
    pred = jax.nn.sigmoid(jax.random.normal(k1, (B, C, H, W), jnp.float32))
    gt = jax.random.uniform(k2, (B, C, H, W), jnp.float32)
    gt = gt.at[:, :, 4, 4].set(1.0).at[:, :, 10, 7].set(1.0)
    out = jax.block_until_ready(focal_loss(pred, gt))
    ref = _ref_focal_loss(pred, gt)
    assert jnp.allclose(out, ref, rtol=1e-5, atol=1e-5), (out, ref)

    # Test 2: awkward shape + tiny tiles — exercises the masked partial tile,
    # the skipped clamped OOB tile, the parallel grid axis and the JAX tail.
    B2, C2, H2, W2 = 2, 2, 25, 26
    pred2 = jax.nn.sigmoid(jax.random.normal(k3, (B2, C2, H2, W2), jnp.float32))
    gt2 = jax.random.uniform(k4, (B2, C2, H2, W2), jnp.float32)
    gt2 = gt2.at[:, :, 3, 5].set(1.0)
    out2 = jax.block_until_ready(focal_loss(pred2, gt2, tile_rows=8))
    ref2 = _ref_focal_loss(pred2, gt2)
    assert jnp.allclose(out2, ref2, rtol=1e-5, atol=1e-5), (out2, ref2)

    # Test 3: larger heatmap — exercises the chunked fori_loop fold, the
    # two-tile megacore split and the masked chunked last block.
    B3, C3, H3, W3 = 2, 4, 160, 128
    pred3 = jax.nn.sigmoid(jax.random.normal(k5, (B3, C3, H3, W3), jnp.float32))
    gt3 = jax.random.uniform(k6, (B3, C3, H3, W3), jnp.float32)
    gt3 = gt3.at[:, :, 7, 11].set(1.0).at[:, :, 90, 64].set(1.0)
    out3 = jax.block_until_ready(focal_loss(pred3, gt3))
    ref3 = _ref_focal_loss(pred3, gt3)
    assert jnp.allclose(out3, ref3, rtol=1e-5, atol=1e-5), (out3, ref3)

    print("KERNEL_OK")
</pallas_src>

<mosaic_0001>
module attributes {stable_mosaic.version = 11 : i64} {
  func.func @_focal_kernel(%arg0: i32, %arg1: i32, %arg2: memref<16x128xf32, #tpu.memory_space<vmem>>, %arg3: memref<16x128xf32, #tpu.memory_space<vmem>>, %arg4: memref<1x16x128xf32, #tpu.memory_space<vmem>>) attributes {dimension_semantics = [#tpu.dimension_semantics<parallel>, #tpu.dimension_semantics<arbitrary>], iteration_bounds = array<i64: 1, 1>, scalar_prefetch = 0 : i64, scratch_operands = 0 : i64, tpu.core_type = #tpu.core_type<tc>, window_params = [{transform_indices = @transform_0, window_bounds = array<i64: 16, 128>}, {transform_indices = @transform_1, window_bounds = array<i64: 16, 128>}, {transform_indices = @transform_2, window_bounds = array<i64: 1, 16, 128>}]} {
    %c0_i32 = arith.constant 0 : i32
    %0 = arith.cmpi eq, %arg1, %c0_i32 : i32
    %1 = arith.extui %0 : i1 to i32
    %c0_i32_0 = arith.constant 0 : i32
    %2 = arith.cmpi ne, %1, %c0_i32_0 : i32
    scf.if %2 {
      %cst_22 = arith.constant 0.000000e+00 : f32
      %45 = vector.broadcast %cst_22 : f32 to vector<1x16x128xf32>
      %c0_23 = arith.constant 0 : index
      %c0_24 = arith.constant 0 : index
      %c0_25 = arith.constant 0 : index
      %46 = vector.load %arg4[%c0_23, %c0_24, %c0_25] : memref<1x16x128xf32, #tpu.memory_space<vmem>>, vector<1x16x128xf32>
      tpu.vector_store %arg4[%c0_23, %c0_24, %c0_25], %45 {strides = array<i32>} : memref<1x16x128xf32, #tpu.memory_space<vmem>>, vector<1x16x128xf32>,
    } else {
    }
    %cst = arith.constant 0.000000e+00 : f32
    %3 = vector.broadcast %cst : f32 to vector<8x128xf32>
    %c0 = arith.constant 0 : index
    %c0_1 = arith.constant 0 : index
    %4 = vector.load %arg2[%c0, %c0_1] : memref<16x128xf32, #tpu.memory_space<vmem>>, vector<16x128xf32>
    %c0_2 = arith.constant 0 : index
    %c0_3 = arith.constant 0 : index
    %5 = vector.load %arg3[%c0_2, %c0_3] : memref<16x128xf32, #tpu.memory_space<vmem>>, vector<16x128xf32>
    %cst_4 = arith.constant 1.000000e+00 : f32
    %6 = vector.broadcast %cst_4 : f32 to vector<16x128xf32>
    %7 = arith.cmpf oeq, %5, %6 : vector<16x128xf32>
    %cst_5 = arith.constant 1.000000e+00 : f32
    %8 = vector.broadcast %cst_5 : f32 to vector<16x128xf32>
    %9 = arith.cmpf olt, %5, %8 : vector<16x128xf32>
    %cst_6 = arith.constant 1.000000e+00 : f32
    %10 = vector.broadcast %cst_6 : f32 to vector<16x128xf32>
    %11 = arith.subf %10, %4 : vector<16x128xf32>
    %cst_7 = arith.constant 1.000000e+00 : f32
    %12 = vector.broadcast %cst_7 : f32 to vector<16x128xf32>
    %13 = arith.subf %12, %5 : vector<16x128xf32>
    %14 = arith.select %7, %4, %11 : vector<16x128xi1>, vector<16x128xf32>
    %15 = math.log %14 : vector<16x128xf32>
    %16 = arith.mulf %13, %13 : vector<16x128xf32>
    %17 = arith.mulf %4, %4 : vector<16x128xf32>
    %18 = arith.mulf %16, %16 : vector<16x128xf32>
    %19 = arith.mulf %17, %18 : vector<16x128xf32>
    %20 = arith.mulf %11, %11 : vector<16x128xf32>
    %cst_8 = arith.constant 0.000000e+00 : f32
    %21 = vector.broadcast %cst_8 : f32 to vector<16x128xf32>
    %22 = arith.select %9, %19, %21 : vector<16x128xi1>, vector<16x128xf32>
    %23 = arith.select %7, %20, %22 : vector<16x128xi1>, vector<16x128xf32>
    %24 = arith.mulf %15, %23 : vector<16x128xf32>
    %25 = arith.extui %7 : vector<16x128xi1> to vector<16x128xi32>
    %26 = arith.sitofp %25 : vector<16x128xi32> to vector<16x128xf32>
    %27 = vector.shape_cast %24 : vector<16x128xf32> to vector<2x8x128xf32>
    %cst_9 = arith.constant dense<0.000000e+00> : vector<8x128xf32>
    %28 = vector.multi_reduction <add>, %27, %cst_9 [0] : vector<2x8x128xf32> to vector<8x128xf32>
    %29 = arith.addf %3, %28 : vector<8x128xf32>
    %30 = vector.shape_cast %26 : vector<16x128xf32> to vector<2x8x128xf32>
    %cst_10 = arith.constant dense<0.000000e+00> : vector<8x128xf32>
    %31 = vector.multi_reduction <add>, %30, %cst_10 [0] : vector<2x8x128xf32> to vector<8x128xf32>
    %32 = arith.addf %3, %31 : vector<8x128xf32>
    %c0_11 = arith.constant 0 : index
    %c0_12 = arith.constant 0 : index
    %c0_13 = arith.constant 0 : index
    %33 = vector.load %arg4[%c0_11, %c0_12, %c0_13] : memref<1x16x128xf32, #tpu.memory_space<vmem>>, vector<1x8x128xf32>
    %34 = vector.shape_cast %33 : vector<1x8x128xf32> to vector<8x128xf32>
    %35 = arith.addf %34, %29 : vector<8x128xf32>
    %c0_14 = arith.constant 0 : index
    %c0_15 = arith.constant 0 : index
    %c0_16 = arith.constant 0 : index
    %36 = vector.load %arg4[%c0_14, %c0_15, %c0_16] : memref<1x16x128xf32, #tpu.memory_space<vmem>>, vector<1x8x128xf32>
    %37 = vector.shape_cast %36 : vector<1x8x128xf32> to vector<8x128xf32>
    %38 = vector.shape_cast %35 : vector<8x128xf32> to vector<1x8x128xf32>
    tpu.vector_store %arg4[%c0_14, %c0_15, %c0_16], %38 {strides = array<i32>} : memref<1x16x128xf32, #tpu.memory_space<vmem>>, vector<1x8x128xf32>,
    %c0_17 = arith.constant 0 : index
    %c8 = arith.constant 8 : index
    %c0_18 = arith.constant 0 : index
    %39 = vector.load %arg4[%c0_17, %c8, %c0_18] : memref<1x16x128xf32, #tpu.memory_space<vmem>>, vector<1x8x128xf32>
    %40 = vector.shape_cast %39 : vector<1x8x128xf32> to vector<8x128xf32>
    %41 = arith.addf %40, %32 : vector<8x128xf32>
    %c0_19 = arith.constant 0 : index
    %c8_20 = arith.constant 8 : index
    %c0_21 = arith.constant 0 : index
    %42 = vector.load %arg4[%c0_19, %c8_20, %c0_21] : memref<1x16x128xf32, #tpu.memory_space<vmem>>, vector<1x8x128xf32>
    %43 = vector.shape_cast %42 : vector<1x8x128xf32> to vector<8x128xf32>
    %44 = vector.shape_cast %41 : vector<8x128xf32> to vector<1x8x128xf32>
    tpu.vector_store %arg4[%c0_19, %c8_20, %c0_21], %44 {strides = array<i32>} : memref<1x16x128xf32, #tpu.memory_space<vmem>>, vector<1x8x128xf32>,
    return
  }
  func.func @transform_0(%arg0: i32, %arg1: i32) -> (i32, i32) {
    %c1_i32 = arith.constant 1 : i32
    %0 = arith.muli %arg0, %c1_i32 : i32
    %1 = arith.addi %0, %arg1 : i32
    %c0_i32 = arith.constant 0 : i32
    %c0_i32_0 = arith.constant 0 : i32
    return %1, %c0_i32 : i32, i32
  }
  func.func @transform_1(%arg0: i32, %arg1: i32) -> (i32, i32) {
    %c1_i32 = arith.constant 1 : i32
    %0 = arith.muli %arg0, %c1_i32 : i32
    %1 = arith.addi %0, %arg1 : i32
    %c0_i32 = arith.constant 0 : i32
    %c0_i32_0 = arith.constant 0 : i32
    return %1, %c0_i32 : i32, i32
  }
  func.func @transform_2(%arg0: i32, %arg1: i32) -> (i32, i32, i32) {
    %c0_i32 = arith.constant 0 : i32
    %c0_i32_0 = arith.constant 0 : i32
    %c0_i32_1 = arith.constant 0 : i32
    return %arg0, %c0_i32, %c0_i32_0 : i32, i32, i32
  }
}

</mosaic_0001>

<llo_original>
// kernel: focal_loss.1
$region0: #{focal_loss.1}
  #allocation0 [shape = 'u32[]', space=smem, size = 0x4, offset = 0x4, fixed_abs, tag = 'smem constant byte address 0x4 - core index']
  #allocation1 [shape = 'u32[144,128]{1,0:T(1,128)}', space=vmem, size = 0x12000, scoped, tag = 'internal scratch']
  %s0 = inlined_call_operand.vmem [shape: f32[16,128], index: 0, kind: input, shape index: {}]
  %s1 = inlined_call_operand.vmem [shape: f32[16,128], index: 1, kind: input, shape index: {}]
  %s2 = inlined_call_operand.vmem [shape: f32[1,16,128], index: 2, kind: output, shape index: {}]
  %s3 = sld [smem:[#allocation0]]
  $region22: #{focal_loss.1} parent=0
    _
  %s5 = ssub.s32 1, %s3
  %s6 = scalar_select 0, %s5, %s3
  // Predicated region
  $region2: #{focal_loss.1} parent=0 // pred_check
    _
  $region3: #{focal_loss.1} parent=0 // pred_check_branch
    %8 = sbr.rel (0) target = $region5
  $region4: #{focal_loss.1} parent=0 // pred_region
    %s9 = sadd.s32 0, 0
    %s10 = smul.u32 2, %s9
    %p11 = scmp.lt.s32.totalorder %s10, 1
    %s12 = scalar_select %p11, %s10, 1
    %s13 = smul.addr %s12, 8
    %s14 = scalar_lea.vmem %s0, %s13
    %s15 = sadd.s32 0, 0
    %s16 = smul.u32 2, %s15
  $region5: #{focal_loss.1} parent=0 // pred_fallthru
    _
  // Predicated region
  $region6: #{focal_loss.1} parent=0 // pred_check
    _
  $region7: #{focal_loss.1} parent=0 // pred_check_branch
    %18 = sbr.rel (0) target = $region9
  $region8: #{focal_loss.1} parent=0 // pred_region
    %s19 = sadd.s32 0, 0
    %s20 = smul.u32 2, %s19
    %p21 = scmp.lt.s32.totalorder %s20, 1
    %s22 = scalar_select %p21, %s20, 1
    %s23 = smul.addr %s22, 8
    %s24 = scalar_lea.vmem %s1, %s23
    %s25 = sadd.s32 0, 0
    %s26 = smul.u32 2, %s25
  $region9: #{focal_loss.1} parent=0 // pred_fallthru
    _
  %s27 = sadd.s32 0, 0
  %s28 = smul.u32 2, %s27
  %p29 = scmp.lt.s32.totalorder %s28, 1
  %s30 = scalar_select %p29, %s28, 1
  %s31 = smul.addr %s30, 8
  %s32 = scalar_lea.vmem %s0, %s31
  %s33 = sadd.s32 0, 0
  %s34 = smul.u32 2, %s33
  %p35 = scmp.lt.s32.totalorder %s34, 1
  %s36 = scalar_select %p35, %s34, 1
  %s37 = smul.addr %s36, 8
  %s38 = scalar_lea.vmem %s1, %s37
  %s39 = sadd.s32 0, 0
  %s40 = smul.u32 2, %s39
  %p41 = scmp.lt.s32.totalorder %s40, 1
  %s42 = scalar_select %p41, %s40, 1
  %s43 = smul.addr %s42, 8
  %s44 = scalar_lea.vmem %s0, %s43
  %s45 = sadd.s32 0, 0
  %s46 = smul.u32 2, %s45
  %s47 = sadd.s32 0, 0
  %s48 = smul.u32 2, %s47
  %p49 = scmp.lt.s32.totalorder %s48, 1
  %s50 = scalar_select %p49, %s48, 1
  %s51 = smul.addr %s50, 8
  %s52 = scalar_lea.vmem %s1, %s51
  %s53 = sadd.s32 0, 0
  %s54 = smul.u32 2, %s53
  %p55 = scmp.eq.s32.totalorder 0, 0
  // Predicated region
  $region10: #{focal_loss.1} parent=0 // pred_check
    %p56 = pneg %p55
  $region11: #{focal_loss.1} parent=0 // pred_check_branch
    %58 = sbr.rel (%p56) target = $region13
  $region12: #{focal_loss.1} parent=0 // pred_region
    %59 = vst [vmem:[%s2] sm:$0xff] 0.0
    %60 = vst [vmem:[%s2 + $0x8] sm:$0xff] 0.0
  $region13: #{focal_loss.1} parent=0 // pred_fallthru
    _
  %v61 = vld [vmem:[%s44] sm:$0xff]
  %v62 = vld [vmem:[%s44 + $0x8] sm:$0xff]
  %v63 = vld [vmem:[%s52] sm:$0xff]
  %v64 = vld [vmem:[%s52 + $0x8] sm:$0xff]
  %vm65 = vcmp.eq.f32.partialorder %v63, 1.0
  %vm66 = vcmp.eq.f32.partialorder %v64, 1.0
  %vm67 = vcmp.lt.f32.partialorder %v63, 1.0
  %vm68 = vcmp.lt.f32.partialorder %v64, 1.0
  %v69 = vsub.f32 1.0, %v61
  %v70 = vsub.f32 1.0, %v62
  %v71 = vsub.f32 1.0, %v63
  %v72 = vsub.f32 1.0, %v64
  %v73 = vsel %vm65, %v61, %v69
  %v74 = vsel %vm66, %v62, %v70
  %v75 = vlog2.pop %v73
  %v76 = vmul.f32 %v75, 0.6931472
  %v77 = vlog2.pop %v74
  %v78 = vmul.f32 %v77, 0.6931472
  %v79 = vmul.f32 %v71, %v71
  %v80 = vmul.f32 %v72, %v72
  %v81 = vmul.f32 %v61, %v61
  %v82 = vmul.f32 %v62, %v62
  %v83 = vmul.f32 %v79, %v79
  %v84 = vmul.f32 %v80, %v80
  %v85 = vmul.f32 %v81, %v83
  %v86 = vmul.f32 %v82, %v84
  %v87 = vmul.f32 %v69, %v69
  %v88 = vmul.f32 %v70, %v70
  %v89 = vsel %vm67, %v85, 0.0
  %v90 = vsel %vm68, %v86, 0.0
  %v91 = vsel %vm65, %v87, %v89
  %v92 = vsel %vm66, %v88, %v90
  %v93 = vmul.f32 %v76, %v91
  %v94 = vmul.f32 %v78, %v92
  %v95 = vsel %vm65, 1, 0
  %v96 = vsel %vm66, 1, 0
  %v97 = vcvt.s32.f32 %v95
  %v98 = vcvt.s32.f32 %v96
  %v99 = vadd.f32 %v93, %v94
  %v100 = vadd.f32 %v99, 0.0
  %v101 = vadd.f32 %v97, %v98
  %v102 = vadd.f32 %v101, 0.0
  %v103 = vld [vmem:[%s2] sm:$0xff]
  %v104 = vadd.f32 %v103, %v100
  %105 = vst [vmem:[%s2] sm:$0xff] %v104
  %v106 = vld [vmem:[%s2 + $0x8] sm:$0xff]
  %v107 = vadd.f32 %v106, %v102
  %108 = vst [vmem:[%s2 + $0x8] sm:$0xff] %v107
  // Predicated region
  $region14: #{focal_loss.1} parent=0 // pred_check
    _
  $region15: #{focal_loss.1} parent=0 // pred_check_branch
    %110 = sbr.rel (0) target = $region17
  $region16: #{focal_loss.1} parent=0 // pred_region
    _
  $region17: #{focal_loss.1} parent=0 // pred_fallthru
    _
  // Predicated region
  $region18: #{focal_loss.1} parent=0 // pred_check
    _
  $region19: #{focal_loss.1} parent=0 // pred_check_branch
    %112 = sbr.rel (0) target = $region21
  $region20: #{focal_loss.1} parent=0 // pred_region
    _
  $region21: #{focal_loss.1} parent=0 // pred_fallthru
    _

</llo_original>
